<compile_context>
chip_gen: v7x
topology: tpu7x:2x2x1
jax: 0.10.0
libtpu: 0.0.40
codegen_flags: <defaults>
</compile_context>

<pallas_src>
import jax
import jax.numpy as jnp
from jax import lax
from jax.experimental import pallas as pl
from jax.experimental.pallas import tpu as pltpu


def gcn_kernel(x_ref, adj_ref, w1_ref, b1_ref, w2_ref, b2_ref, out_ref):
    # x_ref:   (B, N, F)   f32
    # adj_ref: (B, E, N, N) f32  (raw, per-edge-type adjacency)
    # w1_ref:  (F, H1)  b1_ref: (1, H1)  w2_ref: (H1, H2)  b2_ref: (1, H2)
    # out_ref: (B, N, H2)
    B, N, _ = x_ref.shape
    E = adj_ref.shape[1]

    w1 = w1_ref[...]
    b1 = b1_ref[...]
    w2 = w2_ref[...]
    b2 = b2_ref[...]

    # Identity built in-kernel (no dense eye materialized/read from HBM).
    row = lax.broadcasted_iota(jnp.int32, (N, N), 0)
    col = lax.broadcasted_iota(jnp.int32, (N, N), 1)
    eye = jnp.where(row == col, 1.0, 0.0).astype(x_ref.dtype)

    # B and E are tiny and static -> fully unrolled.
    for b in range(B):
        # A = sum_e adj_e + I   (folds the '+ h' residuals: A @ h == sum_e adj_e@h + h)
        a = eye
        for e in range(E):
            a = a + adj_ref[b, e]

        # Layer 1, reassociated:
        #   A @ (x @ W1 + 1*b1) == (A @ x) @ W1 + rowsum(A)[:, None] * b1
        ax = jnp.dot(a, x_ref[b], preferred_element_type=jnp.float32)        # (N, F)
        deg = jnp.sum(a, axis=-1, keepdims=True)                             # (N, 1)
        hidden = jnp.dot(ax, w1, preferred_element_type=jnp.float32) + deg * b1  # (N, H1)

        # Layer 2 (H2 <= H1: project down first, then aggregate with A).
        h2 = jnp.dot(hidden, w2, preferred_element_type=jnp.float32) + b2    # (N, H2)
        out = jnp.dot(a, h2, preferred_element_type=jnp.float32)             # (N, H2)

        out_ref[b] = out.astype(out_ref.dtype)


def graph_convolution(x, adj, w1, b1, w2, b2):
    B, N, _ = x.shape
    H2 = w2.shape[1]
    vmem = pl.BlockSpec(memory_space=pltpu.MemorySpace.VMEM)
    return pl.pallas_call(
        gcn_kernel,
        out_shape=jax.ShapeDtypeStruct((B, N, H2), x.dtype),
        in_specs=[vmem] * 6,          # whole arrays resident in VMEM, no grid
        out_specs=vmem,               # one lane-contiguous slab store
    )(x, adj, w1, b1, w2, b2)


def reference(x, adj, w1, b1, w2, b2):
    # Pure-JAX f32 mirror of the PyTorch forward (activation=None, eval dropout).
    hi = jax.lax.Precision.HIGHEST
    E = adj.shape[1]
    h1 = jnp.matmul(x, w1, precision=hi) + b1                      # (B, N, H1)
    hid = jnp.stack([h1] * E, axis=1)                              # (B, E, N, H1)
    hid = jnp.einsum("bijk,bikl->bijl", adj, hid, precision=hi)
    hidden = jnp.sum(hid, axis=1) + h1                             # (B, N, H1)
    h2 = jnp.matmul(hidden, w2, precision=hi) + b2                 # (B, N, H2)
    out = jnp.stack([h2] * E, axis=1)
    out = jnp.einsum("bijk,bikl->bijl", adj, out, precision=hi)
    return jnp.sum(out, axis=1) + h2                               # (B, N, H2)


if __name__ == "__main__":
    # Module config: in_features=32, out_feature_list=[64, 32], b_dim=4
    B, N, E = 2, 8, 4
    F, H1, H2 = 32, 64, 32

    key = jax.random.PRNGKey(0)
    kx, ka, kw1, kb1, kw2, kb2 = jax.random.split(key, 6)

    x = jax.random.normal(kx, (B, N, F), dtype=jnp.float32)
    adj = jax.random.uniform(ka, (B, E, N, N), dtype=jnp.float32)

    # Deterministic Linear params (stored pre-transposed: y = x @ W + b)
    w1 = jax.random.normal(kw1, (F, H1), dtype=jnp.float32) * (1.0 / F ** 0.5)
    b1 = jax.random.normal(kb1, (1, H1), dtype=jnp.float32) * 0.01
    w2 = jax.random.normal(kw2, (H1, H2), dtype=jnp.float32) * (1.0 / H1 ** 0.5)
    b2 = jax.random.normal(kb2, (1, H2), dtype=jnp.float32) * 0.01

    out = jax.block_until_ready(graph_convolution(x, adj, w1, b1, w2, b2))
    ref = reference(x, adj, w1, b1, w2, b2)
    assert out.shape == (B, N, H2)

    # Full f32 path: errors should be ~1e-6 relative; bound is conservative.
    err = float(jnp.max(jnp.abs(out - ref)))
    scale = float(jnp.max(jnp.abs(ref)))
    assert err <= 5e-3 * scale + 1e-4, f"mismatch vs reference: err={err}, scale={scale}"

    print("KERNEL_OK")
</pallas_src>

<mosaic_0001>
module attributes {stable_mosaic.version = 11 : i64} {
  func.func @gcn_kernel(%arg0: memref<2x8x32xf32, #tpu.memory_space<vmem>>, %arg1: memref<2x4x8x8xf32, #tpu.memory_space<vmem>>, %arg2: memref<32x64xf32, #tpu.memory_space<vmem>>, %arg3: memref<1x64xf32, #tpu.memory_space<vmem>>, %arg4: memref<64x32xf32, #tpu.memory_space<vmem>>, %arg5: memref<1x32xf32, #tpu.memory_space<vmem>>, %arg6: memref<2x8x32xf32, #tpu.memory_space<vmem>>) attributes {dimension_semantics = [], scalar_prefetch = 0 : i64, scratch_operands = 0 : i64, tpu.core_type = #tpu.core_type<tc>} {
    %c0 = arith.constant 0 : index
    %c0_0 = arith.constant 0 : index
    %0 = vector.load %arg2[%c0, %c0_0] : memref<32x64xf32, #tpu.memory_space<vmem>>, vector<32x64xf32>
    %c0_1 = arith.constant 0 : index
    %c0_2 = arith.constant 0 : index
    %1 = vector.load %arg3[%c0_1, %c0_2] : memref<1x64xf32, #tpu.memory_space<vmem>>, vector<1x64xf32>
    %c0_3 = arith.constant 0 : index
    %c0_4 = arith.constant 0 : index
    %2 = vector.load %arg4[%c0_3, %c0_4] : memref<64x32xf32, #tpu.memory_space<vmem>>, vector<64x32xf32>
    %c0_5 = arith.constant 0 : index
    %c0_6 = arith.constant 0 : index
    %3 = vector.load %arg5[%c0_5, %c0_6] : memref<1x32xf32, #tpu.memory_space<vmem>>, vector<1x32xf32>
    %4 = tpu.iota {dimensions = array<i32: 0>} : vector<8x8xi32>
    %5 = tpu.iota {dimensions = array<i32: 1>} : vector<8x8xi32>
    %6 = arith.cmpi eq, %4, %5 : vector<8x8xi32>
    %cst = arith.constant 1.000000e+00 : f32
    %cst_7 = arith.constant 0.000000e+00 : f32
    %7 = vector.broadcast %cst : f32 to vector<8x8xf32>
    %8 = vector.broadcast %cst_7 : f32 to vector<8x8xf32>
    %9 = arith.select %6, %7, %8 : vector<8x8xi1>, vector<8x8xf32>
    %c0_8 = arith.constant 0 : index
    %c0_9 = arith.constant 0 : index
    %c0_10 = arith.constant 0 : index
    %c0_11 = arith.constant 0 : index
    %10 = vector.load %arg1[%c0_8, %c0_9, %c0_10, %c0_11] : memref<2x4x8x8xf32, #tpu.memory_space<vmem>>, vector<1x1x8x8xf32>
    %11 = vector.shape_cast %10 : vector<1x1x8x8xf32> to vector<8x8xf32>
    %12 = arith.addf %9, %11 : vector<8x8xf32>
    %c0_12 = arith.constant 0 : index
    %c1 = arith.constant 1 : index
    %c0_13 = arith.constant 0 : index
    %c0_14 = arith.constant 0 : index
    %13 = vector.load %arg1[%c0_12, %c1, %c0_13, %c0_14] : memref<2x4x8x8xf32, #tpu.memory_space<vmem>>, vector<1x1x8x8xf32>
    %14 = vector.shape_cast %13 : vector<1x1x8x8xf32> to vector<8x8xf32>
    %15 = arith.addf %12, %14 : vector<8x8xf32>
    %c0_15 = arith.constant 0 : index
    %c2 = arith.constant 2 : index
    %c0_16 = arith.constant 0 : index
    %c0_17 = arith.constant 0 : index
    %16 = vector.load %arg1[%c0_15, %c2, %c0_16, %c0_17] : memref<2x4x8x8xf32, #tpu.memory_space<vmem>>, vector<1x1x8x8xf32>
    %17 = vector.shape_cast %16 : vector<1x1x8x8xf32> to vector<8x8xf32>
    %18 = arith.addf %15, %17 : vector<8x8xf32>
    %c0_18 = arith.constant 0 : index
    %c3 = arith.constant 3 : index
    %c0_19 = arith.constant 0 : index
    %c0_20 = arith.constant 0 : index
    %19 = vector.load %arg1[%c0_18, %c3, %c0_19, %c0_20] : memref<2x4x8x8xf32, #tpu.memory_space<vmem>>, vector<1x1x8x8xf32>
    %20 = vector.shape_cast %19 : vector<1x1x8x8xf32> to vector<8x8xf32>
    %21 = arith.addf %18, %20 : vector<8x8xf32>
    %c0_21 = arith.constant 0 : index
    %c0_22 = arith.constant 0 : index
    %c0_23 = arith.constant 0 : index
    %22 = vector.load %arg0[%c0_21, %c0_22, %c0_23] : memref<2x8x32xf32, #tpu.memory_space<vmem>>, vector<1x8x32xf32>
    %23 = vector.shape_cast %22 : vector<1x8x32xf32> to vector<8x32xf32>
    %cst_24 = arith.constant dense<0.000000e+00> : vector<8x32xf32>
    %24 = tpu.matmul %21, %23, %cst_24 {dimension_numbers = #tpu.dot_dimension_numbers<[1], [0], [0], [1], [0, 0, 1, 1], [], []>} : vector<8x8xf32>, vector<8x32xf32>, vector<8x32xf32> -> vector<8x32xf32>
    %cst_25 = arith.constant dense<0.000000e+00> : vector<8xf32>
    %25 = vector.multi_reduction <add>, %21, %cst_25 [1] : vector<8x8xf32> to vector<8xf32>
    %26 = vector.shape_cast %25 : vector<8xf32> to vector<8x1xf32>
    %cst_26 = arith.constant dense<0.000000e+00> : vector<8x64xf32>
    %27 = tpu.matmul %24, %0, %cst_26 {dimension_numbers = #tpu.dot_dimension_numbers<[1], [0], [0], [1], [0, 0, 1, 1], [], []>} : vector<8x32xf32>, vector<32x64xf32>, vector<8x64xf32> -> vector<8x64xf32>
    %28 = vector.broadcast %26 : vector<8x1xf32> to vector<8x64xf32>
    %29 = vector.broadcast %1 : vector<1x64xf32> to vector<8x64xf32>
    %30 = arith.mulf %28, %29 : vector<8x64xf32>
    %31 = arith.addf %27, %30 : vector<8x64xf32>
    %cst_27 = arith.constant dense<0.000000e+00> : vector<8x32xf32>
    %32 = tpu.matmul %31, %2, %cst_27 {dimension_numbers = #tpu.dot_dimension_numbers<[1], [0], [0], [1], [0, 0, 1, 1], [], []>} : vector<8x64xf32>, vector<64x32xf32>, vector<8x32xf32> -> vector<8x32xf32>
    %33 = vector.broadcast %3 : vector<1x32xf32> to vector<8x32xf32>
    %34 = arith.addf %32, %33 : vector<8x32xf32>
    %cst_28 = arith.constant dense<0.000000e+00> : vector<8x32xf32>
    %35 = tpu.matmul %21, %34, %cst_28 {dimension_numbers = #tpu.dot_dimension_numbers<[1], [0], [0], [1], [0, 0, 1, 1], [], []>} : vector<8x8xf32>, vector<8x32xf32>, vector<8x32xf32> -> vector<8x32xf32>
    %c0_29 = arith.constant 0 : index
    %c0_30 = arith.constant 0 : index
    %c0_31 = arith.constant 0 : index
    %36 = vector.load %arg6[%c0_29, %c0_30, %c0_31] : memref<2x8x32xf32, #tpu.memory_space<vmem>>, vector<1x8x32xf32>
    %37 = vector.shape_cast %36 : vector<1x8x32xf32> to vector<8x32xf32>
    %38 = vector.shape_cast %35 : vector<8x32xf32> to vector<1x8x32xf32>
    tpu.vector_store %arg6[%c0_29, %c0_30, %c0_31], %38 {strides = array<i32>} : memref<2x8x32xf32, #tpu.memory_space<vmem>>, vector<1x8x32xf32>,
    %c1_32 = arith.constant 1 : index
    %c0_33 = arith.constant 0 : index
    %c0_34 = arith.constant 0 : index
    %c0_35 = arith.constant 0 : index
    %39 = vector.load %arg1[%c1_32, %c0_33, %c0_34, %c0_35] : memref<2x4x8x8xf32, #tpu.memory_space<vmem>>, vector<1x1x8x8xf32>
    %40 = vector.shape_cast %39 : vector<1x1x8x8xf32> to vector<8x8xf32>
    %41 = arith.addf %9, %40 : vector<8x8xf32>
    %c1_36 = arith.constant 1 : index
    %c1_37 = arith.constant 1 : index
    %c0_38 = arith.constant 0 : index
    %c0_39 = arith.constant 0 : index
    %42 = vector.load %arg1[%c1_36, %c1_37, %c0_38, %c0_39] : memref<2x4x8x8xf32, #tpu.memory_space<vmem>>, vector<1x1x8x8xf32>
    %43 = vector.shape_cast %42 : vector<1x1x8x8xf32> to vector<8x8xf32>
    %44 = arith.addf %41, %43 : vector<8x8xf32>
    %c1_40 = arith.constant 1 : index
    %c2_41 = arith.constant 2 : index
    %c0_42 = arith.constant 0 : index
    %c0_43 = arith.constant 0 : index
    %45 = vector.load %arg1[%c1_40, %c2_41, %c0_42, %c0_43] : memref<2x4x8x8xf32, #tpu.memory_space<vmem>>, vector<1x1x8x8xf32>
    %46 = vector.shape_cast %45 : vector<1x1x8x8xf32> to vector<8x8xf32>
    %47 = arith.addf %44, %46 : vector<8x8xf32>
    %c1_44 = arith.constant 1 : index
    %c3_45 = arith.constant 3 : index
    %c0_46 = arith.constant 0 : index
    %c0_47 = arith.constant 0 : index
    %48 = vector.load %arg1[%c1_44, %c3_45, %c0_46, %c0_47] : memref<2x4x8x8xf32, #tpu.memory_space<vmem>>, vector<1x1x8x8xf32>
    %49 = vector.shape_cast %48 : vector<1x1x8x8xf32> to vector<8x8xf32>
    %50 = arith.addf %47, %49 : vector<8x8xf32>
    %c1_48 = arith.constant 1 : index
    %c0_49 = arith.constant 0 : index
    %c0_50 = arith.constant 0 : index
    %51 = vector.load %arg0[%c1_48, %c0_49, %c0_50] : memref<2x8x32xf32, #tpu.memory_space<vmem>>, vector<1x8x32xf32>
    %52 = vector.shape_cast %51 : vector<1x8x32xf32> to vector<8x32xf32>
    %cst_51 = arith.constant dense<0.000000e+00> : vector<8x32xf32>
    %53 = tpu.matmul %50, %52, %cst_51 {dimension_numbers = #tpu.dot_dimension_numbers<[1], [0], [0], [1], [0, 0, 1, 1], [], []>} : vector<8x8xf32>, vector<8x32xf32>, vector<8x32xf32> -> vector<8x32xf32>
    %cst_52 = arith.constant dense<0.000000e+00> : vector<8xf32>
    %54 = vector.multi_reduction <add>, %50, %cst_52 [1] : vector<8x8xf32> to vector<8xf32>
    %55 = vector.shape_cast %54 : vector<8xf32> to vector<8x1xf32>
    %cst_53 = arith.constant dense<0.000000e+00> : vector<8x64xf32>
    %56 = tpu.matmul %53, %0, %cst_53 {dimension_numbers = #tpu.dot_dimension_numbers<[1], [0], [0], [1], [0, 0, 1, 1], [], []>} : vector<8x32xf32>, vector<32x64xf32>, vector<8x64xf32> -> vector<8x64xf32>
    %57 = vector.broadcast %55 : vector<8x1xf32> to vector<8x64xf32>
    %58 = vector.broadcast %1 : vector<1x64xf32> to vector<8x64xf32>
    %59 = arith.mulf %57, %58 : vector<8x64xf32>
    %60 = arith.addf %56, %59 : vector<8x64xf32>
    %cst_54 = arith.constant dense<0.000000e+00> : vector<8x32xf32>
    %61 = tpu.matmul %60, %2, %cst_54 {dimension_numbers = #tpu.dot_dimension_numbers<[1], [0], [0], [1], [0, 0, 1, 1], [], []>} : vector<8x64xf32>, vector<64x32xf32>, vector<8x32xf32> -> vector<8x32xf32>
    %62 = vector.broadcast %3 : vector<1x32xf32> to vector<8x32xf32>
    %63 = arith.addf %61, %62 : vector<8x32xf32>
    %cst_55 = arith.constant dense<0.000000e+00> : vector<8x32xf32>
    %64 = tpu.matmul %50, %63, %cst_55 {dimension_numbers = #tpu.dot_dimension_numbers<[1], [0], [0], [1], [0, 0, 1, 1], [], []>} : vector<8x8xf32>, vector<8x32xf32>, vector<8x32xf32> -> vector<8x32xf32>
    %c1_56 = arith.constant 1 : index
    %c0_57 = arith.constant 0 : index
    %c0_58 = arith.constant 0 : index
    %65 = vector.load %arg6[%c1_56, %c0_57, %c0_58] : memref<2x8x32xf32, #tpu.memory_space<vmem>>, vector<1x8x32xf32>
    %66 = vector.shape_cast %65 : vector<1x8x32xf32> to vector<8x32xf32>
    %67 = vector.shape_cast %64 : vector<8x32xf32> to vector<1x8x32xf32>
    tpu.vector_store %arg6[%c1_56, %c0_57, %c0_58], %67 {strides = array<i32>} : memref<2x8x32xf32, #tpu.memory_space<vmem>>, vector<1x8x32xf32>,
    return
  }
}

</mosaic_0001>

<llo_original>
// kernel: tpu_custom_call.1
$region0: #{tpu_custom_call.1}
  #allocation0 [shape = 'u32[]', space=smem, size = 0x4, offset = 0x4, fixed_abs, tag = 'smem constant byte address 0x4 - core index']
  #allocation1 [shape = 'u32[144,128]{1,0:T(1,128)}', space=vmem, size = 0x12000, scoped, tag = 'internal scratch']
  %s0 = inlined_call_operand.hbm [shape: f32[2,8,32], index: 0, kind: input, shape index: {}]
  %s1 = inlined_call_operand.vmem [shape: f32[2,4,8,8], index: 1, kind: input, shape index: {}]
  %s2 = inlined_call_operand.vmem [shape: f32[32,64], index: 2, kind: input, shape index: {}]
  %s3 = inlined_call_operand.vmem [shape: f32[1,64], index: 3, kind: input, shape index: {}]
  %s4 = inlined_call_operand.vmem [shape: f32[64,32], index: 4, kind: input, shape index: {}]
  %s5 = inlined_call_operand.vmem [shape: f32[1,32], index: 5, kind: input, shape index: {}]
  %s6 = inlined_call_operand.hbm [shape: f32[2,8,32], index: 6, kind: output, shape index: {}]
  %s7 = sld [smem:[#allocation0]]
  $region38: #{tpu_custom_call.1} parent=0
    _
  %s9 = ssub.s32 1, %s7
  %s10 = scalar_select 0, %s9, %s7
  $region1: #{tpu_custom_call.1} parent=0
    #allocation2 [shape = 'u8[8192]{0}', space=vmem, size = 0x2000, scoped, tag = 'input window, operand 0, single buffered']
    #allocation3 [shape = 's32[1]{0}', space=sflag, size = 0x4, scoped, tag = 'scoped memory for tpu_custom_call.1']
    #allocation4 [shape = 's32[1]{0}', space=sflag, size = 0x4, scoped, tag = 'scoped memory for tpu_custom_call.1']
    #allocation5 [shape = 'u8[8192]{0}', space=vmem, size = 0x2000, scoped, tag = 'output window, operand 0, single buffered']
    %11 = vsyncpa [#allocation3], 0
    %12 = vsyncpa [#allocation4], 0
    // Predicated region
    $region2: #{tpu_custom_call.1} parent=1 // pred_check
      _
    $region3: #{tpu_custom_call.1} parent=1 // pred_check_branch
      %14 = sbr.rel (0) target = $region5
    $region4: #{tpu_custom_call.1} parent=1 // pred_region
      %s16 = ssub.s32 256, 256
      %17 = vsyncadd [#allocation3], %s16
      %s18 = sshll.u32 [#allocation2], 4
      %s19 = int_to_ptr.vmem [resolvable:$true] %s18
      %24 = dma.hbm_to_vmem [thread:$0]  %s0, 256, %s19, [#allocation3], 128, 128, 8
    $region5: #{tpu_custom_call.1} parent=1 // pred_fallthru
      _
    // Predicated region
    $region6: #{tpu_custom_call.1} parent=1 // pred_check
      _
    $region7: #{tpu_custom_call.1} parent=1 // pred_check_branch
      %26 = sbr.rel (0) target = $region9
    $region8: #{tpu_custom_call.1} parent=1 // pred_region
      _
    $region9: #{tpu_custom_call.1} parent=1 // pred_fallthru
      _
    // Predicated region
    $region10: #{tpu_custom_call.1} parent=1 // pred_check
      _
    $region11: #{tpu_custom_call.1} parent=1 // pred_check_branch
      %28 = sbr.rel (0) target = $region13
    $region12: #{tpu_custom_call.1} parent=1 // pred_region
      _
    $region13: #{tpu_custom_call.1} parent=1 // pred_fallthru
      _
    // Predicated region
    $region14: #{tpu_custom_call.1} parent=1 // pred_check
      _
    $region15: #{tpu_custom_call.1} parent=1 // pred_check_branch
      %30 = sbr.rel (0) target = $region17
    $region16: #{tpu_custom_call.1} parent=1 // pred_region
      _
    $region17: #{tpu_custom_call.1} parent=1 // pred_fallthru
      _
    // Predicated region
    $region18: #{tpu_custom_call.1} parent=1 // pred_check
      _
    $region19: #{tpu_custom_call.1} parent=1 // pred_check_branch
      %32 = sbr.rel (0) target = $region21
    $region20: #{tpu_custom_call.1} parent=1 // pred_region
      _
    $region21: #{tpu_custom_call.1} parent=1 // pred_fallthru
      _
    // Predicated region
    $region22: #{tpu_custom_call.1} parent=1 // pred_check
      _
    $region23: #{tpu_custom_call.1} parent=1 // pred_check_branch
      %34 = sbr.rel (0) target = $region25
    $region24: #{tpu_custom_call.1} parent=1 // pred_region
      _
    $region25: #{tpu_custom_call.1} parent=1 // pred_fallthru
      _
    // Predicated region
    $region26: #{tpu_custom_call.1} parent=1 // pred_check
      _
    $region27: #{tpu_custom_call.1} parent=1 // pred_check_branch
      %36 = sbr.rel (0) target = $region29
    $region28: #{tpu_custom_call.1} parent=1 // pred_region
      %37 = dma.done [#allocation3], 256
    $region29: #{tpu_custom_call.1} parent=1 // pred_fallthru
      _
    %v38 = vld [vmem:[%s2] sm:$0xff]
    %v39 = vld [vmem:[%s2 + $0x8] sm:$0xff]
    %v40 = vld [vmem:[%s2 + $0x10] sm:$0xff]
    %v41 = vld [vmem:[%s2 + $0x18] sm:$0xff]
    %v42 = vld [vmem:[%s3] sm:$0x1]
    %v43 = vld [vmem:[%s4] sm:$0xff]
    %v44 = vld [vmem:[%s4 + $0x8] sm:$0xff]
    %v45 = vld [vmem:[%s4 + $0x10] sm:$0xff]
    %v46 = vld [vmem:[%s4 + $0x18] sm:$0xff]
    %v47 = vld [vmem:[%s4 + $0x20] sm:$0xff]
    %v48 = vld [vmem:[%s4 + $0x28] sm:$0xff]
    %v49 = vld [vmem:[%s4 + $0x30] sm:$0xff]
    %v50 = vld [vmem:[%s4 + $0x38] sm:$0xff]
    %v51 = vld [vmem:[%s5] sm:$0x1]
    %v52 = vlaneseq
    %v53 = vshrl.u32 %v52, 7
    %v54 = vlaneseq
    %v55 = vand.u32 %v54, 127
    %vm56 = vcmp.eq.s32.totalorder %v53, %v55
    %v57 = vsel %vm56, 1.0, 0.0
    %v58 = vld [vmem:[%s1] sm:$0xff]
    %v59 = vadd.f32 %v57, %v58
    %s60 = scalar_lea.vmem %s1, 8
    %v61 = vld [vmem:[%s60] sm:$0xff]
    %v62 = vadd.f32 %v59, %v61
    %s63 = scalar_lea.vmem %s1, 16
    %v64 = vld [vmem:[%s63] sm:$0xff]
    %v65 = vadd.f32 %v62, %v64
    %s66 = scalar_lea.vmem %s1, 24
    %v67 = vld [vmem:[%s66] sm:$0xff]
    %v68 = vadd.f32 %v65, %v67
    %v69 = vld [vmem:[#allocation2] sm:$0xff]
    %vm70 = vcmask 64512
    %v72 = vsel %vm70, %v68, 0
    %74 = vmatprep.subr.mxu0 0.0
    %75 = vmatpush1.msra.mxu0 %v69
    %76 = vmatprep.subr.mxu0 0.0
    %77 = vmatpush1.msra.mxu0 0.0
    %78 = vmatprep.subr.mxu0 0.0
    %79 = vmatpush1.msra.mxu0 0.0
    %80 = vmatprep.subr.mxu0 0.0
    %81 = vmatpush1.msra.mxu0 0.0
    %82 = vmatprep.subr.mxu0 0.0
    %83 = vmatpush1.msra.mxu0 0.0
    %84 = vmatprep.subr.mxu0 0.0
    %85 = vmatpush1.msra.mxu0 0.0
    %86 = vmatprep.subr.mxu0 0.0
    %87 = vmatpush1.msra.mxu0 0.0
    %88 = vmatprep.subr.mxu0 0.0
    %89 = vmatpush1.msra.mxu0 0.0
    %90 = vmatprep.subr.mxu0 0.0
    %91 = vmatpush1.msra.mxu0 0.0
    %92 = vmatprep.subr.mxu0 0.0
    %93 = vmatpush1.msra.mxu0 0.0
    %94 = vmatprep.subr.mxu0 0.0
    %95 = vmatpush1.msra.mxu0 0.0
    %96 = vmatprep.subr.mxu0 0.0
    %97 = vmatpush1.msra.mxu0 0.0
    %98 = vmatprep.subr.mxu0 0.0
    %99 = vmatpush1.msra.mxu0 0.0
    %100 = vmatprep.subr.mxu0 0.0
    %101 = vmatpush1.msra.mxu0 0.0
    %102 = vmatprep.subr.mxu0 0.0
    %103 = vmatpush1.msra.mxu0 0.0
    %104 = vmatprep.subr.mxu0 0.0
    %105 = vmatpush1.msra.mxu0 0.0
    %106 = vmatprep.subr.mxu0 0.0
    %107 = vmatpush1.msra.mxu0 0.0
    %108 = vmatprep.subr.mxu0 0.0
    %109 = vmatpush1.msra.mxu0 0.0
    %110 = vmatprep.subr.mxu0 0.0
    %111 = vmatpush1.msra.mxu0 0.0
    %112 = vmatprep.subr.mxu0 0.0
    %113 = vmatpush1.msra.mxu0 0.0
    %114 = vmatprep.subr.mxu0 0.0
    %115 = vmatpush1.msra.mxu0 0.0
    %116 = vmatprep.subr.mxu0 0.0
    %117 = vmatpush1.msra.mxu0 0.0
    %118 = vmatprep.subr.mxu0 0.0
    %119 = vmatpush1.msra.mxu0 0.0
    %120 = vmatprep.subr.mxu0 0.0
    %121 = vmatpush1.msra.mxu0 0.0
    %122 = vmatprep.subr.mxu0 0.0
    %123 = vmatpush1.msra.mxu0 0.0
    %124 = vmatprep.subr.mxu0 0.0
    %125 = vmatpush1.msra.mxu0 0.0
    %126 = vmatprep.subr.mxu0 0.0
    %127 = vmatpush1.msra.mxu0 0.0
    %128 = vmatprep.subr.mxu0 0.0
    %129 = vmatpush1.msra.mxu0 0.0
    %130 = vmatprep.subr.mxu0 0.0
    %131 = vmatpush1.msra.mxu0 0.0
    %132 = vmatprep.subr.mxu0 0.0
    %133 = vmatpush1.msra.mxu0 0.0
    %134 = vmatprep.subr.mxu0 0.0
    %135 = vmatpush1.msra.mxu0 0.0
    %136 = vmatprep.subr.mxu0 0.0
    %137 = vmatpush1.msra.mxu0 0.0
    %138 = vmatprep.mubr.f32.mxu0 0.0
    %139 = vmatmul.mubr.f32.gmra.mrb[0].mxu0 %v72
    %v140 = vpop.f32.mrb[0].mxu0
    %v141 = vadd.f32 0.0, %v140
    %v142 = vpop.f32.mrb[0].mxu0
    %143 = vdwg.mxu0
    %v144 = vsel %vm70, %v68, 0.0
    %145 = vadd.xlane.f32.xlu0 %v144
    %v146 = vpop.xlane.xlu0 %145
    %v148 = vlaneseq
    %v149 = vshrl.u32 %v148, 7
    %v150 = vsub.s32 0, %v149
    %v151 = vrot.slane %v42, %v150
    %v153 = vmul.f32 %v146, %v151
    %vm154 = vcmask 261120
    %v156 = vsel %vm154, %v141, 0
    %158 = vmatprep.subr.mxu0 0.0
    %159 = vmatpush1.msra.mxu0 %v38
    %160 = vmatprep.subr.mxu0 0.0
    %161 = vmatpush1.msra.mxu0 %v39
    %162 = vmatprep.subr.mxu0 0.0
    %163 = vmatpush1.msra.mxu0 %v40
    %164 = vmatprep.subr.mxu0 0.0
    %165 = vmatpush1.msra.mxu0 %v41
    %166 = vmatprep.subr.mxu0 0.0
    %167 = vmatpush1.msra.mxu0 0.0
    %168 = vmatprep.subr.mxu0 0.0
    %169 = vmatpush1.msra.mxu0 0.0
    %170 = vmatprep.subr.mxu0 0.0
    %171 = vmatpush1.msra.mxu0 0.0
    %172 = vmatprep.subr.mxu0 0.0
    %173 = vmatpush1.msra.mxu0 0.0
    %174 = vmatprep.subr.mxu0 0.0
    %175 = vmatpush1.msra.mxu0 0.0
    %176 = vmatprep.subr.mxu0 0.0
    %177 = vmatpush1.msra.mxu0 0.0
    %178 = vmatprep.subr.mxu0 0.0
    %179 = vmatpush1.msra.mxu0 0.0
    %180 = vmatprep.subr.mxu0 0.0
    %181 = vmatpush1.msra.mxu0 0.0
    %182 = vmatprep.subr.mxu0 0.0
    %183 = vmatpush1.msra.mxu0 0.0
    %184 = vmatprep.subr.mxu0 0.0
    %185 = vmatpush1.msra.mxu0 0.0
    %186 = vmatprep.subr.mxu0 0.0
    %187 = vmatpush1.msra.mxu0 0.0
    %188 = vmatprep.subr.mxu0 0.0
    %189 = vmatpush1.msra.mxu0 0.0
    %190 = vmatprep.subr.mxu0 0.0
    %191 = vmatpush1.msra.mxu0 0.0
    %192 = vmatprep.subr.mxu0 0.0
    %193 = vmatpush1.msra.mxu0 0.0
    %194 = vmatprep.subr.mxu0 0.0
    %195 = vmatpush1.msra.mxu0 0.0
    %196 = vmatprep.subr.mxu0 0.0
    %197 = vmatpush1.msra.mxu0 0.0
    %198 = vmatprep.subr.mxu0 0.0
    %199 = vmatpush1.msra.mxu0 0.0
    %200 = vmatprep.subr.mxu0 0.0
    %201 = vmatpush1.msra.mxu0 0.0
    %202 = vmatprep.subr.mxu0 0.0
    %203 = vmatpush1.msra.mxu0 0.0
    %204 = vmatprep.subr.mxu0 0.0
    %205 = vmatpush1.msra.mxu0 0.0
    %206 = vmatprep.subr.mxu0 0.0
    %207 = vmatpush1.msra.mxu0 0.0
    %208 = vmatprep.subr.mxu0 0.0
    %209 = vmatpush1.msra.mxu0 0.0
    %210 = vmatprep.subr.mxu0 0.0
    %211 = vmatpush1.msra.mxu0 0.0
    %212 = vmatprep.subr.mxu0 0.0
    %213 = vmatpush1.msra.mxu0 0.0
    %214 = vmatprep.subr.mxu0 0.0
    %215 = vmatpush1.msra.mxu0 0.0
    %216 = vmatprep.subr.mxu0 0.0
    %217 = vmatpush1.msra.mxu0 0.0
    %218 = vmatprep.subr.mxu0 0.0
    %219 = vmatpush1.msra.mxu0 0.0
    %220 = vmatprep.subr.mxu0 0.0
    %221 = vmatpush1.msra.mxu0 0.0
    %222 = vmatprep.mubr.f32.mxu0 0.0
    %223 = vmatmul.mubr.f32.gmra.mrb[0].mxu0 %v156
    %v224 = vpop.f32.mrb[0].mxu0
    %v225 = vadd.f32 %v153, %v224
    %v226 = vpop.f32.mrb[0].mxu0
    %227 = vdwg.mxu0
    %v229 = vlaneseq
    %v230 = vshrl.u32 %v229, 7
    %v231 = vsub.s32 0, %v230
    %v232 = vrot.slane %v51, %v231
    %vm234 = vcmask 523264
    %v236 = vsel %vm234, %v225, 0
    %238 = vmatprep.subr.mxu0 0.0
    %239 = vmatpush1.msra.mxu0 %v43
    %240 = vmatprep.subr.mxu0 0.0
    %241 = vmatpush1.msra.mxu0 %v44
    %242 = vmatprep.subr.mxu0 0.0
    %243 = vmatpush1.msra.mxu0 %v45
    %244 = vmatprep.subr.mxu0 0.0
    %245 = vmatpush1.msra.mxu0 %v46
    %246 = vmatprep.subr.mxu0 0.0
    %247 = vmatpush1.msra.mxu0 %v47
    %248 = vmatprep.subr.mxu0 0.0
    %249 = vmatpush1.msra.mxu0 %v48
    %250 = vmatprep.subr.mxu0 0.0
    %251 = vmatpush1.msra.mxu0 %v49
    %252 = vmatprep.subr.mxu0 0.0
    %253 = vmatpush1.msra.mxu0 %v50
    %254 = vmatprep.subr.mxu0 0.0
    %255 = vmatpush1.msra.mxu0 0.0
    %256 = vmatprep.subr.mxu0 0.0
    %257 = vmatpush1.msra.mxu0 0.0
    %258 = vmatprep.subr.mxu0 0.0
    %259 = vmatpush1.msra.mxu0 0.0
    %260 = vmatprep.subr.mxu0 0.0
    %261 = vmatpush1.msra.mxu0 0.0
    %262 = vmatprep.subr.mxu0 0.0
    %263 = vmatpush1.msra.mxu0 0.0
    %264 = vmatprep.subr.mxu0 0.0
    %265 = vmatpush1.msra.mxu0 0.0
    %266 = vmatprep.subr.mxu0 0.0
    %267 = vmatpush1.msra.mxu0 0.0
    %268 = vmatprep.subr.mxu0 0.0
    %269 = vmatpush1.msra.mxu0 0.0
    %270 = vmatprep.subr.mxu0 0.0
    %271 = vmatpush1.msra.mxu0 0.0
    %272 = vmatprep.subr.mxu0 0.0
    %273 = vmatpush1.msra.mxu0 0.0
    %274 = vmatprep.subr.mxu0 0.0
    %275 = vmatpush1.msra.mxu0 0.0
    %276 = vmatprep.subr.mxu0 0.0
    %277 = vmatpush1.msra.mxu0 0.0
    %278 = vmatprep.subr.mxu0 0.0
    %279 = vmatpush1.msra.mxu0 0.0
    %280 = vmatprep.subr.mxu0 0.0
    %281 = vmatpush1.msra.mxu0 0.0
    %282 = vmatprep.subr.mxu0 0.0
    %283 = vmatpush1.msra.mxu0 0.0
    %284 = vmatprep.subr.mxu0 0.0
    %285 = vmatpush1.msra.mxu0 0.0
    %286 = vmatprep.subr.mxu0 0.0
    %287 = vmatpush1.msra.mxu0 0.0
    %288 = vmatprep.subr.mxu0 0.0
    %289 = vmatpush1.msra.mxu0 0.0
    %290 = vmatprep.subr.mxu0 0.0
    %291 = vmatpush1.msra.mxu0 0.0
    %292 = vmatprep.subr.mxu0 0.0
    %293 = vmatpush1.msra.mxu0 0.0
    %294 = vmatprep.subr.mxu0 0.0
    %295 = vmatpush1.msra.mxu0 0.0
    %296 = vmatprep.subr.mxu0 0.0
    %297 = vmatpush1.msra.mxu0 0.0
    %298 = vmatprep.subr.mxu0 0.0
    %299 = vmatpush1.msra.mxu0 0.0
    %300 = vmatprep.subr.mxu0 0.0
    %301 = vmatpush1.msra.mxu0 0.0
    %302 = vmatprep.mubr.f32.mxu0 0.0
    %303 = vmatmul.mubr.f32.gmra.mrb[0].mxu0 %v236
    %v304 = vpop.f32.mrb[0].mxu0
    %v305 = vadd.f32 %v232, %v304
    %v306 = vpop.f32.mrb[0].mxu0
    %307 = vdwg.mxu0
    %308 = vmatprep.subr.mxu0 0.0
    %309 = vmatpush1.msra.mxu0 %v305
    %310 = vmatprep.subr.mxu0 0.0
    %311 = vmatpush1.msra.mxu0 0.0
    %312 = vmatprep.subr.mxu0 0.0
    %313 = vmatpush1.msra.mxu0 0.0
    %314 = vmatprep.subr.mxu0 0.0
    %315 = vmatpush1.msra.mxu0 0.0
    %316 = vmatprep.subr.mxu0 0.0
    %317 = vmatpush1.msra.mxu0 0.0
    %318 = vmatprep.subr.mxu0 0.0
    %319 = vmatpush1.msra.mxu0 0.0
    %320 = vmatprep.subr.mxu0 0.0
    %321 = vmatpush1.msra.mxu0 0.0
    %322 = vmatprep.subr.mxu0 0.0
    %323 = vmatpush1.msra.mxu0 0.0
    %324 = vmatprep.subr.mxu0 0.0
    %325 = vmatpush1.msra.mxu0 0.0
    %326 = vmatprep.subr.mxu0 0.0
    %327 = vmatpush1.msra.mxu0 0.0
    %328 = vmatprep.subr.mxu0 0.0
    %329 = vmatpush1.msra.mxu0 0.0
    %330 = vmatprep.subr.mxu0 0.0
    %331 = vmatpush1.msra.mxu0 0.0
    %332 = vmatprep.subr.mxu0 0.0
    %333 = vmatpush1.msra.mxu0 0.0
    %334 = vmatprep.subr.mxu0 0.0
    %335 = vmatpush1.msra.mxu0 0.0
    %336 = vmatprep.subr.mxu0 0.0
    %337 = vmatpush1.msra.mxu0 0.0
    %338 = vmatprep.subr.mxu0 0.0
    %339 = vmatpush1.msra.mxu0 0.0
    %340 = vmatprep.subr.mxu0 0.0
    %341 = vmatpush1.msra.mxu0 0.0
    %342 = vmatprep.subr.mxu0 0.0
    %343 = vmatpush1.msra.mxu0 0.0
    %344 = vmatprep.subr.mxu0 0.0
    %345 = vmatpush1.msra.mxu0 0.0
    %346 = vmatprep.subr.mxu0 0.0
    %347 = vmatpush1.msra.mxu0 0.0
    %348 = vmatprep.subr.mxu0 0.0
    %349 = vmatpush1.msra.mxu0 0.0
    %350 = vmatprep.subr.mxu0 0.0
    %351 = vmatpush1.msra.mxu0 0.0
    %352 = vmatprep.subr.mxu0 0.0
    %353 = vmatpush1.msra.mxu0 0.0
    %354 = vmatprep.subr.mxu0 0.0
    %355 = vmatpush1.msra.mxu0 0.0
    %356 = vmatprep.subr.mxu0 0.0
    %357 = vmatpush1.msra.mxu0 0.0
    %358 = vmatprep.subr.mxu0 0.0
    %359 = vmatpush1.msra.mxu0 0.0
    %360 = vmatprep.subr.mxu0 0.0
    %361 = vmatpush1.msra.mxu0 0.0
    %362 = vmatprep.subr.mxu0 0.0
    %363 = vmatpush1.msra.mxu0 0.0
    %364 = vmatprep.subr.mxu0 0.0
    %365 = vmatpush1.msra.mxu0 0.0
    %366 = vmatprep.subr.mxu0 0.0
    %367 = vmatpush1.msra.mxu0 0.0
    %368 = vmatprep.subr.mxu0 0.0
    %369 = vmatpush1.msra.mxu0 0.0
    %370 = vmatprep.subr.mxu0 0.0
    %371 = vmatpush1.msra.mxu0 0.0
    %372 = vmatprep.mubr.f32.mxu0 0.0
    %373 = vmatmul.mubr.f32.gmra.mrb[0].mxu0 %v72
    %v374 = vpop.f32.mrb[0].mxu0
    %v375 = vadd.f32 0.0, %v374
    %v376 = vpop.f32.mrb[0].mxu0
    %377 = vdwg.mxu0
    %378 = vst.msk [vmem:[#allocation5] sm:$0xff] %vm154, %v375
    %s379 = scalar_lea.vmem %s1, 32
    %v380 = vld [vmem:[%s379] sm:$0xff]
    %v381 = vadd.f32 %v57, %v380
    %s382 = scalar_lea.vmem %s1, 40
    %v383 = vld [vmem:[%s382] sm:$0xff]
    %v384 = vadd.f32 %v381, %v383
    %s385 = scalar_lea.vmem %s1, 48
    %v386 = vld [vmem:[%s385] sm:$0xff]
    %v387 = vadd.f32 %v384, %v386
    %s388 = scalar_lea.vmem %s1, 56
    %v389 = vld [vmem:[%s388] sm:$0xff]
    %v390 = vadd.f32 %v387, %v389
    %s391 = scalar_lea.vmem [#allocation2], 8
    %v392 = vld [vmem:[%s391] sm:$0xff]
    %v394 = vsel %vm70, %v390, 0
    %396 = vmatprep.subr.mxu0 0.0
    %397 = vmatpush1.msra.mxu0 %v392
    %398 = vmatprep.subr.mxu0 0.0
    %399 = vmatpush1.msra.mxu0 0.0
    %400 = vmatprep.subr.mxu0 0.0
    %401 = vmatpush1.msra.mxu0 0.0
    %402 = vmatprep.subr.mxu0 0.0
    %403 = vmatpush1.msra.mxu0 0.0
    %404 = vmatprep.subr.mxu0 0.0
    %405 = vmatpush1.msra.mxu0 0.0
    %406 = vmatprep.subr.mxu0 0.0
    %407 = vmatpush1.msra.mxu0 0.0
    %408 = vmatprep.subr.mxu0 0.0
    %409 = vmatpush1.msra.mxu0 0.0
    %410 = vmatprep.subr.mxu0 0.0
    %411 = vmatpush1.msra.mxu0 0.0
    %412 = vmatprep.subr.mxu0 0.0
    %413 = vmatpush1.msra.mxu0 0.0
    %414 = vmatprep.subr.mxu0 0.0
    %415 = vmatpush1.msra.mxu0 0.0
    %416 = vmatprep.subr.mxu0 0.0
    %417 = vmatpush1.msra.mxu0 0.0
    %418 = vmatprep.subr.mxu0 0.0
    %419 = vmatpush1.msra.mxu0 0.0
    %420 = vmatprep.subr.mxu0 0.0
    %421 = vmatpush1.msra.mxu0 0.0
    %422 = vmatprep.subr.mxu0 0.0
    %423 = vmatpush1.msra.mxu0 0.0
    %424 = vmatprep.subr.mxu0 0.0
    %425 = vmatpush1.msra.mxu0 0.0
    %426 = vmatprep.subr.mxu0 0.0
    %427 = vmatpush1.msra.mxu0 0.0
    %428 = vmatprep.subr.mxu0 0.0
    %429 = vmatpush1.msra.mxu0 0.0
    %430 = vmatprep.subr.mxu0 0.0
    %431 = vmatpush1.msra.mxu0 0.0
    %432 = vmatprep.subr.mxu0 0.0
    %433 = vmatpush1.msra.mxu0 0.0
    %434 = vmatprep.subr.mxu0 0.0
    %435 = vmatpush1.msra.mxu0 0.0
    %436 = vmatprep.subr.mxu0 0.0
    %437 = vmatpush1.msra.mxu0 0.0
    %438 = vmatprep.subr.mxu0 0.0
    %439 = vmatpush1.msra.mxu0 0.0
    %440 = vmatprep.subr.mxu0 0.0
    %441 = vmatpush1.msra.mxu0 0.0
    %442 = vmatprep.subr.mxu0 0.0
    %443 = vmatpush1.msra.mxu0 0.0
    %444 = vmatprep.subr.mxu0 0.0
    %445 = vmatpush1.msra.mxu0 0.0
    %446 = vmatprep.subr.mxu0 0.0
    %447 = vmatpush1.msra.mxu0 0.0
    %448 = vmatprep.subr.mxu0 0.0
    %449 = vmatpush1.msra.mxu0 0.0
    %450 = vmatprep.subr.mxu0 0.0
    %451 = vmatpush1.msra.mxu0 0.0
    %452 = vmatprep.subr.mxu0 0.0
    %453 = vmatpush1.msra.mxu0 0.0
    %454 = vmatprep.subr.mxu0 0.0
    %455 = vmatpush1.msra.mxu0 0.0
    %456 = vmatprep.subr.mxu0 0.0
    %457 = vmatpush1.msra.mxu0 0.0
    %458 = vmatprep.subr.mxu0 0.0
    %459 = vmatpush1.msra.mxu0 0.0
    %460 = vmatprep.mubr.f32.mxu0 0.0
    %461 = vmatmul.mubr.f32.gmra.mrb[0].mxu0 %v394
    %v462 = vpop.f32.mrb[0].mxu0
    %v463 = vadd.f32 0.0, %v462
    %v464 = vpop.f32.mrb[0].mxu0
    %465 = vdwg.mxu0
    %v466 = vsel %vm70, %v390, 0.0
    %467 = vadd.xlane.f32.xlu0 %v466
    %v468 = vpop.xlane.xlu0 %467
    %v469 = vmul.f32 %v468, %v151
    %v471 = vsel %vm154, %v463, 0
    %473 = vmatprep.subr.mxu0 0.0
    %474 = vmatpush1.msra.mxu0 %v38
    %475 = vmatprep.subr.mxu0 0.0
    %476 = vmatpush1.msra.mxu0 %v39
    %477 = vmatprep.subr.mxu0 0.0
    %478 = vmatpush1.msra.mxu0 %v40
    %479 = vmatprep.subr.mxu0 0.0
    %480 = vmatpush1.msra.mxu0 %v41
    %481 = vmatprep.subr.mxu0 0.0
    %482 = vmatpush1.msra.mxu0 0.0
    %483 = vmatprep.subr.mxu0 0.0
    %484 = vmatpush1.msra.mxu0 0.0
    %485 = vmatprep.subr.mxu0 0.0
    %486 = vmatpush1.msra.mxu0 0.0
    %487 = vmatprep.subr.mxu0 0.0
    %488 = vmatpush1.msra.mxu0 0.0
    %489 = vmatprep.subr.mxu0 0.0
    %490 = vmatpush1.msra.mxu0 0.0
    %491 = vmatprep.subr.mxu0 0.0
    %492 = vmatpush1.msra.mxu0 0.0
    %493 = vmatprep.subr.mxu0 0.0
    %494 = vmatpush1.msra.mxu0 0.0
    %495 = vmatprep.subr.mxu0 0.0
    %496 = vmatpush1.msra.mxu0 0.0
    %497 = vmatprep.subr.mxu0 0.0
    %498 = vmatpush1.msra.mxu0 0.0
    %499 = vmatprep.subr.mxu0 0.0
    %500 = vmatpush1.msra.mxu0 0.0
    %501 = vmatprep.subr.mxu0 0.0
    %502 = vmatpush1.msra.mxu0 0.0
    %503 = vmatprep.subr.mxu0 0.0
    %504 = vmatpush1.msra.mxu0 0.0
    %505 = vmatprep.subr.mxu0 0.0
    %506 = vmatpush1.msra.mxu0 0.0
    %507 = vmatprep.subr.mxu0 0.0
    %508 = vmatpush1.msra.mxu0 0.0
    %509 = vmatprep.subr.mxu0 0.0
    %510 = vmatpush1.msra.mxu0 0.0
    %511 = vmatprep.subr.mxu0 0.0
    %512 = vmatpush1.msra.mxu0 0.0
    %513 = vmatprep.subr.mxu0 0.0
    %514 = vmatpush1.msra.mxu0 0.0
    %515 = vmatprep.subr.mxu0 0.0
    %516 = vmatpush1.msra.mxu0 0.0
    %517 = vmatprep.subr.mxu0 0.0
    %518 = vmatpush1.msra.mxu0 0.0
    %519 = vmatprep.subr.mxu0 0.0
    %520 = vmatpush1.msra.mxu0 0.0
    %521 = vmatprep.subr.mxu0 0.0
    %522 = vmatpush1.msra.mxu0 0.0
    %523 = vmatprep.subr.mxu0 0.0
    %524 = vmatpush1.msra.mxu0 0.0
    %525 = vmatprep.subr.mxu0 0.0
    %526 = vmatpush1.msra.mxu0 0.0
    %527 = vmatprep.subr.mxu0 0.0
    %528 = vmatpush1.msra.mxu0 0.0
    %529 = vmatprep.subr.mxu0 0.0
    %530 = vmatpush1.msra.mxu0 0.0
    %531 = vmatprep.subr.mxu0 0.0
    %532 = vmatpush1.msra.mxu0 0.0
    %533 = vmatprep.subr.mxu0 0.0
    %534 = vmatpush1.msra.mxu0 0.0
    %535 = vmatprep.subr.mxu0 0.0
    %536 = vmatpush1.msra.mxu0 0.0
    %537 = vmatprep.mubr.f32.mxu0 0.0
    %538 = vmatmul.mubr.f32.gmra.mrb[0].mxu0 %v471
    %v539 = vpop.f32.mrb[0].mxu0
    %v540 = vadd.f32 %v469, %v539
    %v541 = vpop.f32.mrb[0].mxu0
    %542 = vdwg.mxu0
    %v544 = vsel %vm234, %v540, 0
    %546 = vmatprep.subr.mxu0 0.0
    %547 = vmatpush1.msra.mxu0 %v43
    %548 = vmatprep.subr.mxu0 0.0
    %549 = vmatpush1.msra.mxu0 %v44
    %550 = vmatprep.subr.mxu0 0.0
    %551 = vmatpush1.msra.mxu0 %v45
    %552 = vmatprep.subr.mxu0 0.0
    %553 = vmatpush1.msra.mxu0 %v46
    %554 = vmatprep.subr.mxu0 0.0
    %555 = vmatpush1.msra.mxu0 %v47
    %556 = vmatprep.subr.mxu0 0.0
    %557 = vmatpush1.msra.mxu0 %v48
    %558 = vmatprep.subr.mxu0 0.0
    %559 = vmatpush1.msra.mxu0 %v49
    %560 = vmatprep.subr.mxu0 0.0
    %561 = vmatpush1.msra.mxu0 %v50
    %562 = vmatprep.subr.mxu0 0.0
    %563 = vmatpush1.msra.mxu0 0.0
    %564 = vmatprep.subr.mxu0 0.0
    %565 = vmatpush1.msra.mxu0 0.0
    %566 = vmatprep.subr.mxu0 0.0
    %567 = vmatpush1.msra.mxu0 0.0
    %568 = vmatprep.subr.mxu0 0.0
    %569 = vmatpush1.msra.mxu0 0.0
    %570 = vmatprep.subr.mxu0 0.0
    %571 = vmatpush1.msra.mxu0 0.0
    %572 = vmatprep.subr.mxu0 0.0
    %573 = vmatpush1.msra.mxu0 0.0
    %574 = vmatprep.subr.mxu0 0.0
    %575 = vmatpush1.msra.mxu0 0.0
    %576 = vmatprep.subr.mxu0 0.0
    %577 = vmatpush1.msra.mxu0 0.0
    %578 = vmatprep.subr.mxu0 0.0
    %579 = vmatpush1.msra.mxu0 0.0
    %580 = vmatprep.subr.mxu0 0.0
    %581 = vmatpush1.msra.mxu0 0.0
    %582 = vmatprep.subr.mxu0 0.0
    %583 = vmatpush1.msra.mxu0 0.0
    %584 = vmatprep.subr.mxu0 0.0
    %585 = vmatpush1.msra.mxu0 0.0
    %586 = vmatprep.subr.mxu0 0.0
    %587 = vmatpush1.msra.mxu0 0.0
    %588 = vmatprep.subr.mxu0 0.0
    %589 = vmatpush1.msra.mxu0 0.0
    %590 = vmatprep.subr.mxu0 0.0
    %591 = vmatpush1.msra.mxu0 0.0
    %592 = vmatprep.subr.mxu0 0.0
    %593 = vmatpush1.msra.mxu0 0.0
    %594 = vmatprep.subr.mxu0 0.0
    %595 = vmatpush1.msra.mxu0 0.0
    %596 = vmatprep.subr.mxu0 0.0
    %597 = vmatpush1.msra.mxu0 0.0
    %598 = vmatprep.subr.mxu0 0.0
    %599 = vmatpush1.msra.mxu0 0.0
    %600 = vmatprep.subr.mxu0 0.0
    %601 = vmatpush1.msra.mxu0 0.0
    %602 = vmatprep.subr.mxu0 0.0
    %603 = vmatpush1.msra.mxu0 0.0
    %604 = vmatprep.subr.mxu0 0.0
    %605 = vmatpush1.msra.mxu0 0.0
    %606 = vmatprep.subr.mxu0 0.0
    %607 = vmatpush1.msra.mxu0 0.0
    %608 = vmatprep.subr.mxu0 0.0
    %609 = vmatpush1.msra.mxu0 0.0
    %610 = vmatprep.mubr.f32.mxu0 0.0
    %611 = vmatmul.mubr.f32.gmra.mrb[0].mxu0 %v544
    %v612 = vpop.f32.mrb[0].mxu0
    %v613 = vadd.f32 %v232, %v612
    %v614 = vpop.f32.mrb[0].mxu0
    %615 = vdwg.mxu0
    %616 = vmatprep.subr.mxu0 0.0
    %617 = vmatpush1.msra.mxu0 %v613
    %618 = vmatprep.subr.mxu0 0.0
    %619 = vmatpush1.msra.mxu0 0.0
    %620 = vmatprep.subr.mxu0 0.0
    %621 = vmatpush1.msra.mxu0 0.0
    %622 = vmatprep.subr.mxu0 0.0
    %623 = vmatpush1.msra.mxu0 0.0
    %624 = vmatprep.subr.mxu0 0.0
    %625 = vmatpush1.msra.mxu0 0.0
    %626 = vmatprep.subr.mxu0 0.0
    %627 = vmatpush1.msra.mxu0 0.0
    %628 = vmatprep.subr.mxu0 0.0
    %629 = vmatpush1.msra.mxu0 0.0
    %630 = vmatprep.subr.mxu0 0.0
    %631 = vmatpush1.msra.mxu0 0.0
    %632 = vmatprep.subr.mxu0 0.0
    %633 = vmatpush1.msra.mxu0 0.0
    %634 = vmatprep.subr.mxu0 0.0
    %635 = vmatpush1.msra.mxu0 0.0
    %636 = vmatprep.subr.mxu0 0.0
    %637 = vmatpush1.msra.mxu0 0.0
    %638 = vmatprep.subr.mxu0 0.0
    %639 = vmatpush1.msra.mxu0 0.0
    %640 = vmatprep.subr.mxu0 0.0
    %641 = vmatpush1.msra.mxu0 0.0
    %642 = vmatprep.subr.mxu0 0.0
    %643 = vmatpush1.msra.mxu0 0.0
    %644 = vmatprep.subr.mxu0 0.0
    %645 = vmatpush1.msra.mxu0 0.0
    %646 = vmatprep.subr.mxu0 0.0
    %647 = vmatpush1.msra.mxu0 0.0
    %648 = vmatprep.subr.mxu0 0.0
    %649 = vmatpush1.msra.mxu0 0.0
    %650 = vmatprep.subr.mxu0 0.0
    %651 = vmatpush1.msra.mxu0 0.0
    %652 = vmatprep.subr.mxu0 0.0
    %653 = vmatpush1.msra.mxu0 0.0
    %654 = vmatprep.subr.mxu0 0.0
    %655 = vmatpush1.msra.mxu0 0.0
    %656 = vmatprep.subr.mxu0 0.0
    %657 = vmatpush1.msra.mxu0 0.0
    %658 = vmatprep.subr.mxu0 0.0
    %659 = vmatpush1.msra.mxu0 0.0
    %660 = vmatprep.subr.mxu0 0.0
    %661 = vmatpush1.msra.mxu0 0.0
    %662 = vmatprep.subr.mxu0 0.0
    %663 = vmatpush1.msra.mxu0 0.0
    %664 = vmatprep.subr.mxu0 0.0
    %665 = vmatpush1.msra.mxu0 0.0
    %666 = vmatprep.subr.mxu0 0.0
    %667 = vmatpush1.msra.mxu0 0.0
    %668 = vmatprep.subr.mxu0 0.0
    %669 = vmatpush1.msra.mxu0 0.0
    %670 = vmatprep.subr.mxu0 0.0
    %671 = vmatpush1.msra.mxu0 0.0
    %672 = vmatprep.subr.mxu0 0.0
    %673 = vmatpush1.msra.mxu0 0.0
    %674 = vmatprep.subr.mxu0 0.0
    %675 = vmatpush1.msra.mxu0 0.0
    %676 = vmatprep.subr.mxu0 0.0
    %677 = vmatpush1.msra.mxu0 0.0
    %678 = vmatprep.subr.mxu0 0.0
    %679 = vmatpush1.msra.mxu0 0.0
    %680 = vmatprep.mubr.f32.mxu0 0.0
    %681 = vmatmul.mubr.f32.gmra.mrb[0].mxu0 %v394
    %v682 = vpop.f32.mrb[0].mxu0
    %v683 = vadd.f32 0.0, %v682
    %v684 = vpop.f32.mrb[0].mxu0
    %685 = vdwg.mxu0
    %s686 = scalar_lea.vmem [#allocation5], 8
    %687 = vst.msk [vmem:[%s686] sm:$0xff] %vm154, %v683
    // Predicated region
    $region30: #{tpu_custom_call.1} parent=1 // pred_check
      _
    $region31: #{tpu_custom_call.1} parent=1 // pred_check_branch
      %689 = sbr.rel (0) target = $region33
    $region32: #{tpu_custom_call.1} parent=1 // pred_region
      %s691 = ssub.s32 256, 256
      %692 = vsyncadd [#allocation4], %s691
      %s693 = sshll.u32 [#allocation5], 4
      %s694 = int_to_ptr.vmem [resolvable:$true] %s693
      %699 = dma.vmem_to_hbm [thread:$0]  %s694, 256, %s6, [#allocation4], 128, 128, 8
    $region33: #{tpu_custom_call.1} parent=1 // pred_fallthru
      _
    // Predicated region
    $region34: #{tpu_custom_call.1} parent=1 // pred_check
      _
    $region35: #{tpu_custom_call.1} parent=1 // pred_check_branch
      %701 = sbr.rel (0) target = $region37
    $region36: #{tpu_custom_call.1} parent=1 // pred_region
      %702 = dma.done [#allocation4], 256
    $region37: #{tpu_custom_call.1} parent=1 // pred_fallthru
      _
    %703 = vsyncpa [#allocation3], 1
    %704 = vsyncpa [#allocation4], 1

</llo_original>
